<compile_context>
chip_gen: v7x
topology: tpu7x:2x2x1
jax: 0.10.0
libtpu: 0.0.40
codegen_flags: <defaults>
</compile_context>

<pallas_src>
import functools

import jax
import jax.numpy as jnp
from jax.experimental import pallas as pl
from jax.experimental.pallas import tpu as pltpu


def _round_up(x, m):
    return (x + m - 1) // m * m


def _latent_attn_kernel(x_ref, wqkv_ref, wo_ref, o_ref, ctx_ref, *,
                        seq, n_head, dkp, temp):
    """One grid step processes `block_b` full sequences.

    x_ref   : (block_b*seq, Dp)           input rows, lane-dense (Dp % 128 == 0)
    wqkv_ref: (Dp, 3*n_head*dkp)          fused, head-padded QKV weights
    wo_ref  : (n_head*dkp, Dp)            head-padded output projection
    o_ref   : (block_b*seq, Dp)
    ctx_ref : (block_b*seq, n_head*dkp)   VMEM scratch: per-head context slab
    """
    m = x_ref.shape[0]
    bt = m // seq

    # Fused QKV projection: one tall MXU matmul, f32 accumulation.
    qkv = jnp.dot(x_ref[...], wqkv_ref[...],
                  preferred_element_type=jnp.float32)          # (M, 3*H*dkp)

    for h in range(n_head):                                    # static unroll
        base = 3 * h * dkp
        # 128-lane-aligned slices (per-head width padded to dkp): no masked
        # selects or lane relayouts. temp is applied to Q (dkp lanes), not to
        # the (S, S) score matrix.
        q = qkv[:, base:base + dkp] * temp
        k = qkv[:, base + dkp:base + 2 * dkp]
        v = qkv[:, base + 2 * dkp:base + 3 * dkp]

        qb = q.reshape(bt, seq, dkp)                           # leading split only
        kb = k.reshape(bt, seq, dkp)
        vb = v.reshape(bt, seq, dkp)

        # Scores batched over the block's sequences; contraction on the
        # trailing axis of both operands (no explicit K transpose). Padded
        # lanes are zero in both q and k, so they do not change the scores.
        sc = jnp.einsum("bqd,bkd->bqk", qb, kb,
                        preferred_element_type=jnp.float32)    # (bt, S, S)
        mx = jnp.max(sc, axis=-1, keepdims=True)
        e = jnp.exp(sc - mx)
        denom = jnp.sum(e, axis=-1, keepdims=True)             # (bt, S, 1)

        # PV matmul on the UNNORMALIZED weights; normalize the (S, dkp)
        # context afterwards (S/d_kv fewer VALU multiplies than scaling e).
        ctx = jnp.einsum("bqk,bkd->bqd", e, vb,
                         preferred_element_type=jnp.float32)   # (bt, S, dkp)
        ctx = ctx * pl.reciprocal(denom, approx=True)

        # Collect this head into the slab at a 128-aligned column offset.
        ctx_ref[:, h * dkp:(h + 1) * dkp] = (
            ctx.reshape(m, dkp).astype(ctx_ref.dtype))

    # ONE (M, H*dkp) @ (H*dkp, Dp) output projection after the head loop.
    # Padded slab columns are zero and the matching Wo rows are zero, so the
    # result equals concat_heads(ctx) @ Wo exactly.
    out = jnp.dot(ctx_ref[...], wo_ref[...],
                  preferred_element_type=jnp.float32)          # (M, Dp)
    o_ref[...] = out.astype(o_ref.dtype)


def _pack_wqkv(wq, wk, wv, n_head, d_kv, d_pad, dk_pad, dtype):
    """Fuse and pad Wq/Wk/Wv to (Dp, 3*H*dkp); head h occupies columns
    [3*h*dkp, 3*(h+1)*dkp) in [q | k | v] order, each 128-aligned."""
    d_latent = wq.shape[0]

    def per_head(w):                                            # (D, H*d_kv)
        w = w.reshape(d_latent, n_head, d_kv).transpose(1, 0, 2)  # (H, D, d_kv)
        return jnp.pad(w, ((0, 0), (0, d_pad - d_latent), (0, dk_pad - d_kv)))

    stacked = jnp.stack([per_head(wq), per_head(wk), per_head(wv)], axis=1)
    packed = stacked.transpose(2, 0, 1, 3).reshape(d_pad, 3 * n_head * dk_pad)
    return packed.astype(dtype)


def _pack_wo(wo, n_head, d_kv, d_pad, dk_pad, dtype):
    """Pad Wo to (H*dkp, Dp) with zero rows at padded head positions and zero
    columns at padded output positions."""
    d_latent = wo.shape[1]
    wo3 = wo.reshape(n_head, d_kv, d_latent)
    wo3 = jnp.pad(wo3, ((0, 0), (0, dk_pad - d_kv), (0, d_pad - d_latent)))
    return wo3.reshape(n_head * dk_pad, d_pad).astype(dtype)


def _pick_block_b(B, S, d_pad, h_dk_pad, dk_pad, w_bytes, io_bytes, *,
                  target_rows=512, vmem_budget=28 * 1024 * 1024, min_grid=2):
    """Choose the batch tile: (a) per-step VMEM under budget, (b) prefer
    >= min_grid grid steps so both v7x TensorCores get work, (c) stop growing
    once ~target_rows rows/step (v6e sweet spot; use ~256 on v5e)."""
    def vmem_est(bb):
        rows = bb * S
        x_in = 2 * rows * d_pad * io_bytes              # double-buffered input
        out = 2 * rows * d_pad * 4                      # double-buffered f32 output
        wts = (d_pad * 3 * h_dk_pad + h_dk_pad * d_pad) * w_bytes  # single-buffered
        qkv = rows * 3 * h_dk_pad * 4
        scores = 2 * bb * S * S * 4                     # scores + exp (one head live)
        ctx_h = bb * S * dk_pad * 4
        slab = rows * h_dk_pad * w_bytes
        return x_in + out + wts + qkv + scores + ctx_h + slab

    divisors = [d for d in range(1, B + 1) if B % d == 0]
    feasible = [d for d in divisors if vmem_est(d) <= vmem_budget] or [1]
    cands = [d for d in feasible if B // d >= min_grid] or feasible
    for d in sorted(cands):
        if d * S >= target_rows:
            return d
    return max(cands)


def latent_transformer_forward(x, wq, wk, wv, wo, *, n_head, d_head, d_kv,
                               block_b=None, mxu_dtype=jnp.bfloat16):
    """x: (B, S, d_latent). Returns (B, S, d_latent)."""
    B, S, D = x.shape
    hkv = n_head * d_kv
    assert wq.shape == (D, hkv) and wk.shape == (D, hkv) and wv.shape == (D, hkv)
    assert wo.shape == (hkv, D)
    # NOTE: module spec scales by d_head ** -0.5 even though the per-head
    # projection width is d_kv (Attention(temp=d_head**-0.5)).
    temp = float(d_head) ** (-0.5)

    # Lane-dense, 128-aligned layout (no-op when already multiples of 128).
    d_pad = _round_up(D, 128)
    dk_pad = _round_up(d_kv, 128)
    h_dk_pad = n_head * dk_pad

    w_bytes = jnp.dtype(mxu_dtype).itemsize
    io_bytes = w_bytes                        # x is fed to the kernel in mxu_dtype

    if block_b is None:
        block_b = _pick_block_b(B, S, d_pad, h_dk_pad, dk_pad, w_bytes, io_bytes)
    if (block_b * S) % 8 != 0:                # keep the (8,128) block rule
        block_b = B
    assert B % block_b == 0, "block_b must divide the batch"
    grid_b = B // block_b
    rows_blk = block_b * S

    # Pack / pad / cast weights and inputs once in the wrapper (halves DMA
    # bytes for x and the weights when mxu_dtype is bf16).
    wqkv_p = _pack_wqkv(wq, wk, wv, n_head, d_kv, d_pad, dk_pad, mxu_dtype)
    wo_p = _pack_wo(wo, n_head, d_kv, d_pad, dk_pad, mxu_dtype)
    x2 = x.reshape(B * S, D)
    if d_pad != D:
        x2 = jnp.pad(x2, ((0, 0), (0, d_pad - D)))
    x2 = x2.astype(mxu_dtype)

    kernel = functools.partial(_latent_attn_kernel, seq=S, n_head=n_head,
                               dkp=dk_pad, temp=temp)

    out_p = pl.pallas_call(
        kernel,
        out_shape=jax.ShapeDtypeStruct((B * S, d_pad), x.dtype),
        grid_spec=pltpu.PrefetchScalarGridSpec(
            num_scalar_prefetch=0,
            grid=(grid_b,),
            in_specs=[
                pl.BlockSpec((rows_blk, d_pad), lambda i: (i, 0)),      # x rows
                # Constant-index weights: single-buffered to halve their VMEM.
                pl.BlockSpec((d_pad, 3 * h_dk_pad), lambda i: (0, 0),
                             pipeline_mode=pl.Buffered(1)),
                pl.BlockSpec((h_dk_pad, d_pad), lambda i: (0, 0),
                             pipeline_mode=pl.Buffered(1)),
            ],
            out_specs=pl.BlockSpec((rows_blk, d_pad), lambda i: (i, 0)),
            scratch_shapes=[pltpu.VMEM((rows_blk, h_dk_pad), mxu_dtype)],
        ),
        compiler_params=pltpu.CompilerParams(
            dimension_semantics=("parallel",),
            vmem_limit_bytes=48 * 1024 * 1024),
    )(x2, wqkv_p, wo_p)

    return out_p[:, :D].reshape(B, S, D)


def _reference_attention(x, wq, wk, wv, wo, *, n_head, d_head, d_kv):
    """Pure-JAX reference for the correctness check."""
    B, S, D = x.shape
    temp = float(d_head) ** (-0.5)
    q = (x @ wq).reshape(B, S, n_head, d_kv)
    k = (x @ wk).reshape(B, S, n_head, d_kv)
    v = (x @ wv).reshape(B, S, n_head, d_kv)
    scores = jnp.einsum("bqhd,bkhd->bhqk", q, k) * temp
    p = jax.nn.softmax(scores, axis=-1)
    ctx = jnp.einsum("bhqk,bkhd->bqhd", p, v).reshape(B, S, n_head * d_kv)
    return ctx @ wo


if __name__ == "__main__":
    # Small shapes consistent with the module's forward.
    n_head, d_head, d_kv, d_latent = 2, 16, 16, 32
    B, S = 2, 8

    key = jax.random.PRNGKey(0)
    kx, kq, kk, kv, ko = jax.random.split(key, 5)
    x = jax.random.normal(kx, (B, S, d_latent), dtype=jnp.float32)
    scale_in = 1.0 / (d_latent ** 0.5)
    scale_out = 1.0 / ((n_head * d_kv) ** 0.5)
    wq = jax.random.normal(kq, (d_latent, n_head * d_kv), jnp.float32) * scale_in
    wk = jax.random.normal(kk, (d_latent, n_head * d_kv), jnp.float32) * scale_in
    wv = jax.random.normal(kv, (d_latent, n_head * d_kv), jnp.float32) * scale_in
    wo = jax.random.normal(ko, (n_head * d_kv, d_latent), jnp.float32) * scale_out

    ref = _reference_attention(x, wq, wk, wv, wo,
                               n_head=n_head, d_head=d_head, d_kv=d_kv)

    # f32 MXU path: tight check (residual error is the approx EUP reciprocal
    # in the softmax epilogue, ~1e-3 level on O(1) outputs).
    out_f32 = latent_transformer_forward(x, wq, wk, wv, wo,
                                         n_head=n_head, d_head=d_head,
                                         d_kv=d_kv, mxu_dtype=jnp.float32)
    out_f32 = jax.block_until_ready(out_f32)
    assert out_f32.shape == (B, S, d_latent)
    assert jnp.allclose(out_f32, ref, atol=5e-3, rtol=5e-3), "f32 mismatch vs reference"

    # Default bf16-MXU path (recommended on v5e/v6e/v7x): projection matmuls
    # take bf16 operands with f32 accumulation, so the tolerance is loosened.
    out_bf16 = latent_transformer_forward(x, wq, wk, wv, wo,
                                          n_head=n_head, d_head=d_head,
                                          d_kv=d_kv)
    out_bf16 = jax.block_until_ready(out_bf16)
    assert out_bf16.shape == (B, S, d_latent)
    assert jnp.allclose(out_bf16, ref, atol=1e-1, rtol=5e-2), "bf16 mismatch vs reference"

    print("KERNEL_OK")
</pallas_src>

<mosaic_0001>
module attributes {stable_mosaic.version = 11 : i64} {
  func.func @_latent_attn_kernel(%arg0: i32, %arg1: memref<8x128xf32, #tpu.memory_space<vmem>>, %arg2: memref<128x768xf32, #tpu.memory_space<vmem>>, %arg3: memref<256x128xf32, #tpu.memory_space<vmem>>, %arg4: memref<8x128xf32, #tpu.memory_space<vmem>>, %arg5: memref<8x256xf32, #tpu.memory_space<vmem>>) attributes {dimension_semantics = [#tpu.dimension_semantics<parallel>], iteration_bounds = array<i64: 2>, scalar_prefetch = 0 : i64, scratch_operands = 1 : i64, tpu.core_type = #tpu.core_type<tc>, window_params = [{transform_indices = @transform_0, window_bounds = array<i64: 8, 128>}, {pipeline_mode = #tpu.pipeline_mode<synchronous>, transform_indices = @transform_1, window_bounds = array<i64: 128, 768>}, {pipeline_mode = #tpu.pipeline_mode<synchronous>, transform_indices = @transform_2, window_bounds = array<i64: 256, 128>}, {transform_indices = @transform_3, window_bounds = array<i64: 8, 128>}]} {
    %c0 = arith.constant 0 : index
    %c0_0 = arith.constant 0 : index
    %0 = vector.load %arg1[%c0, %c0_0] : memref<8x128xf32, #tpu.memory_space<vmem>>, vector<8x128xf32>
    %c0_1 = arith.constant 0 : index
    %c0_2 = arith.constant 0 : index
    %1 = vector.load %arg2[%c0_1, %c0_2] : memref<128x768xf32, #tpu.memory_space<vmem>>, vector<128x768xf32>
    %cst = arith.constant dense<0.000000e+00> : vector<8x768xf32>
    %2 = tpu.matmul %0, %1, %cst {dimension_numbers = #tpu.dot_dimension_numbers<[1], [0], [0], [1], [0, 0, 1, 1], [], []>} : vector<8x128xf32>, vector<128x768xf32>, vector<8x768xf32> -> vector<8x768xf32>
    %3 = vector.extract_strided_slice %2 {offsets = [0, 0], sizes = [8, 128], strides = [1, 1]} : vector<8x768xf32> to vector<8x128xf32>
    %cst_3 = arith.constant 2.500000e-01 : f32
    %4 = vector.broadcast %cst_3 : f32 to vector<8x128xf32>
    %5 = arith.mulf %3, %4 : vector<8x128xf32>
    %6 = vector.extract_strided_slice %2 {offsets = [0, 128], sizes = [8, 128], strides = [1, 1]} : vector<8x768xf32> to vector<8x128xf32>
    %7 = vector.extract_strided_slice %2 {offsets = [0, 256], sizes = [8, 128], strides = [1, 1]} : vector<8x768xf32> to vector<8x128xf32>
    %8 = vector.shape_cast %5 : vector<8x128xf32> to vector<1x8x128xf32>
    %9 = vector.shape_cast %6 : vector<8x128xf32> to vector<1x8x128xf32>
    %10 = vector.shape_cast %7 : vector<8x128xf32> to vector<1x8x128xf32>
    "tpu.trace_start"() <{level = 10 : i32, message = "bqd,bkd->bqk"}> : () -> ()
    %cst_4 = arith.constant dense<0.000000e+00> : vector<1x8x8xf32>
    %11 = tpu.matmul %8, %9, %cst_4 {dimension_numbers = #tpu.dot_dimension_numbers<[2], [2], [1], [1], [0, 0, 0, 1, 1, 1], [0], [0]>} : vector<1x8x128xf32>, vector<1x8x128xf32>, vector<1x8x8xf32> -> vector<1x8x8xf32>
    "tpu.trace_stop"() : () -> ()
    %cst_5 = arith.constant dense<0xFF800000> : vector<1x8xf32>
    %12 = vector.multi_reduction <maximumf>, %11, %cst_5 [2] : vector<1x8x8xf32> to vector<1x8xf32>
    %13 = vector.shape_cast %12 : vector<1x8xf32> to vector<1x8x1xf32>
    %14 = vector.broadcast %13 : vector<1x8x1xf32> to vector<1x8x8xf32>
    %15 = arith.subf %11, %14 : vector<1x8x8xf32>
    %16 = math.exp %15 : vector<1x8x8xf32>
    %cst_6 = arith.constant dense<0.000000e+00> : vector<1x8xf32>
    %17 = vector.multi_reduction <add>, %16, %cst_6 [2] : vector<1x8x8xf32> to vector<1x8xf32>
    %18 = vector.shape_cast %17 : vector<1x8xf32> to vector<1x8x1xf32>
    "tpu.trace_start"() <{level = 10 : i32, message = "bqk,bkd->bqd"}> : () -> ()
    %cst_7 = arith.constant dense<0.000000e+00> : vector<1x8x128xf32>
    %19 = tpu.matmul %16, %10, %cst_7 {dimension_numbers = #tpu.dot_dimension_numbers<[2], [1], [1], [2], [0, 0, 0, 1, 1, 2], [0], [0]>} : vector<1x8x8xf32>, vector<1x8x128xf32>, vector<1x8x128xf32> -> vector<1x8x128xf32>
    "tpu.trace_stop"() : () -> ()
    %20 = tpu.reciprocal %18 {approx = true} : vector<1x8x1xf32> -> vector<1x8x1xf32>
    %21 = vector.broadcast %20 : vector<1x8x1xf32> to vector<1x8x128xf32>
    %22 = arith.mulf %19, %21 : vector<1x8x128xf32>
    %23 = vector.shape_cast %22 : vector<1x8x128xf32> to vector<8x128xf32>
    %c0_8 = arith.constant 0 : index
    %c0_9 = arith.constant 0 : index
    %24 = vector.load %arg5[%c0_8, %c0_9] : memref<8x256xf32, #tpu.memory_space<vmem>>, vector<8x128xf32>
    tpu.vector_store %arg5[%c0_8, %c0_9], %23 {strides = array<i32>} : memref<8x256xf32, #tpu.memory_space<vmem>>, vector<8x128xf32>,
    %25 = vector.extract_strided_slice %2 {offsets = [0, 384], sizes = [8, 128], strides = [1, 1]} : vector<8x768xf32> to vector<8x128xf32>
    %cst_10 = arith.constant 2.500000e-01 : f32
    %26 = vector.broadcast %cst_10 : f32 to vector<8x128xf32>
    %27 = arith.mulf %25, %26 : vector<8x128xf32>
    %28 = vector.extract_strided_slice %2 {offsets = [0, 512], sizes = [8, 128], strides = [1, 1]} : vector<8x768xf32> to vector<8x128xf32>
    %29 = vector.extract_strided_slice %2 {offsets = [0, 640], sizes = [8, 128], strides = [1, 1]} : vector<8x768xf32> to vector<8x128xf32>
    %30 = vector.shape_cast %27 : vector<8x128xf32> to vector<1x8x128xf32>
    %31 = vector.shape_cast %28 : vector<8x128xf32> to vector<1x8x128xf32>
    %32 = vector.shape_cast %29 : vector<8x128xf32> to vector<1x8x128xf32>
    "tpu.trace_start"() <{level = 10 : i32, message = "bqd,bkd->bqk"}> : () -> ()
    %cst_11 = arith.constant dense<0.000000e+00> : vector<1x8x8xf32>
    %33 = tpu.matmul %30, %31, %cst_11 {dimension_numbers = #tpu.dot_dimension_numbers<[2], [2], [1], [1], [0, 0, 0, 1, 1, 1], [0], [0]>} : vector<1x8x128xf32>, vector<1x8x128xf32>, vector<1x8x8xf32> -> vector<1x8x8xf32>
    "tpu.trace_stop"() : () -> ()
    %cst_12 = arith.constant dense<0xFF800000> : vector<1x8xf32>
    %34 = vector.multi_reduction <maximumf>, %33, %cst_12 [2] : vector<1x8x8xf32> to vector<1x8xf32>
    %35 = vector.shape_cast %34 : vector<1x8xf32> to vector<1x8x1xf32>
    %36 = vector.broadcast %35 : vector<1x8x1xf32> to vector<1x8x8xf32>
    %37 = arith.subf %33, %36 : vector<1x8x8xf32>
    %38 = math.exp %37 : vector<1x8x8xf32>
    %cst_13 = arith.constant dense<0.000000e+00> : vector<1x8xf32>
    %39 = vector.multi_reduction <add>, %38, %cst_13 [2] : vector<1x8x8xf32> to vector<1x8xf32>
    %40 = vector.shape_cast %39 : vector<1x8xf32> to vector<1x8x1xf32>
    "tpu.trace_start"() <{level = 10 : i32, message = "bqk,bkd->bqd"}> : () -> ()
    %cst_14 = arith.constant dense<0.000000e+00> : vector<1x8x128xf32>
    %41 = tpu.matmul %38, %32, %cst_14 {dimension_numbers = #tpu.dot_dimension_numbers<[2], [1], [1], [2], [0, 0, 0, 1, 1, 2], [0], [0]>} : vector<1x8x8xf32>, vector<1x8x128xf32>, vector<1x8x128xf32> -> vector<1x8x128xf32>
    "tpu.trace_stop"() : () -> ()
    %42 = tpu.reciprocal %40 {approx = true} : vector<1x8x1xf32> -> vector<1x8x1xf32>
    %43 = vector.broadcast %42 : vector<1x8x1xf32> to vector<1x8x128xf32>
    %44 = arith.mulf %41, %43 : vector<1x8x128xf32>
    %45 = vector.shape_cast %44 : vector<1x8x128xf32> to vector<8x128xf32>
    %c0_15 = arith.constant 0 : index
    %c128 = arith.constant 128 : index
    %46 = vector.load %arg5[%c0_15, %c128] : memref<8x256xf32, #tpu.memory_space<vmem>>, vector<8x128xf32>
    tpu.vector_store %arg5[%c0_15, %c128], %45 {strides = array<i32>} : memref<8x256xf32, #tpu.memory_space<vmem>>, vector<8x128xf32>,
    %c0_16 = arith.constant 0 : index
    %c0_17 = arith.constant 0 : index
    %47 = vector.load %arg5[%c0_16, %c0_17] : memref<8x256xf32, #tpu.memory_space<vmem>>, vector<8x256xf32>
    %c0_18 = arith.constant 0 : index
    %c0_19 = arith.constant 0 : index
    %48 = vector.load %arg3[%c0_18, %c0_19] : memref<256x128xf32, #tpu.memory_space<vmem>>, vector<256x128xf32>
    %cst_20 = arith.constant dense<0.000000e+00> : vector<8x128xf32>
    %49 = tpu.matmul %47, %48, %cst_20 {dimension_numbers = #tpu.dot_dimension_numbers<[1], [0], [0], [1], [0, 0, 1, 1], [], []>} : vector<8x256xf32>, vector<256x128xf32>, vector<8x128xf32> -> vector<8x128xf32>
    %c0_21 = arith.constant 0 : index
    %c0_22 = arith.constant 0 : index
    %50 = vector.load %arg4[%c0_21, %c0_22] : memref<8x128xf32, #tpu.memory_space<vmem>>, vector<8x128xf32>
    tpu.vector_store %arg4[%c0_21, %c0_22], %49 {strides = array<i32>} : memref<8x128xf32, #tpu.memory_space<vmem>>, vector<8x128xf32>,
    return
  }
  func.func @transform_0(%arg0: i32) -> (i32, i32) {
    %c0_i32 = arith.constant 0 : i32
    %c0_i32_0 = arith.constant 0 : i32
    return %arg0, %c0_i32 : i32, i32
  }
  func.func @transform_1(%arg0: i32) -> (i32, i32) {
    %c0_i32 = arith.constant 0 : i32
    %c0_i32_0 = arith.constant 0 : i32
    %c0_i32_1 = arith.constant 0 : i32
    return %c0_i32, %c0_i32_0 : i32, i32
  }
  func.func @transform_2(%arg0: i32) -> (i32, i32) {
    %c0_i32 = arith.constant 0 : i32
    %c0_i32_0 = arith.constant 0 : i32
    %c0_i32_1 = arith.constant 0 : i32
    return %c0_i32, %c0_i32_0 : i32, i32
  }
  func.func @transform_3(%arg0: i32) -> (i32, i32) {
    %c0_i32 = arith.constant 0 : i32
    %c0_i32_0 = arith.constant 0 : i32
    return %arg0, %c0_i32 : i32, i32
  }
}

</mosaic_0001>

<llo_original>
// kernel: tpu_custom_call.1
$region0: #{tpu_custom_call.1}
  #allocation0 [shape = 'u32[]', space=smem, size = 0x4, offset = 0x4, fixed_abs, tag = 'smem constant byte address 0x4 - core index']
  #allocation1 [shape = 'u32[144,128]{1,0:T(1,128)}', space=vmem, size = 0x12000, scoped, tag = 'internal scratch']
  #allocation2 [shape = 'f32[8,256]{1,0:T(8,128)}', space=vmem, size = 0x2000, scoped, tag = 'scratch operand']
  %s0 = inlined_call_operand.hbm [shape: f32[16,128], index: 0, kind: input, shape index: {}]
  %s1 = inlined_call_operand.hbm [shape: f32[128,768], index: 1, kind: input, shape index: {}]
  %s2 = inlined_call_operand.hbm [shape: f32[256,128], index: 2, kind: input, shape index: {}]
  %s3 = inlined_call_operand.hbm [shape: f32[16,128], index: 3, kind: output, shape index: {}]
  %s4 = sld [smem:[#allocation0]]
  $region57: #{tpu_custom_call.1} parent=0
    _
  %s6 = ssub.s32 1, %s4
  %s7 = scalar_select 0, %s6, %s4
  $region1: #{tpu_custom_call.1} parent=0
    #allocation3 [shape = 'u8[8192]{0}', space=vmem, size = 0x2000, scoped, tag = 'input window, operand 0']
    #allocation4 [shape = 's32[2]{0}', space=sflag, size = 0x8, scoped, tag = 'scoped memory for tpu_custom_call.1']
    #allocation5 [shape = 's32[2]{0}', space=sflag, size = 0x8, scoped, tag = 'scoped memory for tpu_custom_call.1']
    #allocation6 [shape = 'u8[393216]{0}', space=vmem, size = 0x60000, scoped, tag = 'input window, operand 1, single buffered']
    #allocation7 [shape = 's32[1]{0}', space=sflag, size = 0x4, scoped, tag = 'scoped memory for tpu_custom_call.1']
    #allocation8 [shape = 'u8[131072]{0}', space=vmem, size = 0x20000, scoped, tag = 'input window, operand 2, single buffered']
    #allocation9 [shape = 'u8[8192]{0}', space=vmem, size = 0x2000, scoped, tag = 'output window, operand 0']
    %8 = vsyncpa [#allocation4], 0
    %s9 = scalar_lea.sflag [#allocation4], 1
    %10 = vsyncpa %s9, 0
    %11 = vsyncpa [#allocation7], 0
    %12 = vsyncpa [#allocation5], 0
    %s13 = scalar_lea.sflag [#allocation5], 1
    %14 = vsyncpa %s13, 0
    loop: start=0, step=1, limit=4
    $region2: #{tpu_custom_call.1} parent=1 // loop_pre_header
      _
    $region3: #{tpu_custom_call.1} parent=1 // loop_header
      %s16 = sphi 0, %s20
      %p17 = scmp.ge.s32.totalorder %s16, 4
      %s26 = sphi 0, %s28
      %s29 = sphi 0, %s26
      %s30 = sphi 0, %s29
      %s46 = sphi 0, %s30
      %s50 = sphi 0, %s50
      %s52 = sphi 0, %s50
      %s53 = sphi 0, %s52
      %s67 = sphi 0, %s53
      %s71 = sphi 0, %s71
      %s73 = sphi 0, %s71
      %s74 = sphi 0, %s73
      %s88 = sphi 0, %s74
      %s94 = sphi 0, %s96
      %s97 = sphi 0, %s94
      %s98 = sphi 0, %s97
      %s114 = sphi 0, %s98
    $region4: #{tpu_custom_call.1} parent=1 // loop_header_branch
      %19 = sbr.rel (%p17) target = $region8
    $region5: #{tpu_custom_call.1} parent=1 // loop_body
      %s21 = ssub.s32 %s16, 1
      %s22 = ssub.s32 %s16, 2
      %s23 = sadd.s32 %s16, 1
      %s24 = ssub.s32 %s16, %s23
      %p25 = scmp.eq.s32.totalorder %s24, 0
      %s27 = sadd.s32 %s26, 1
      %s28 = scalar_select %p25, %s26, %s27
      %p31 = pneg %p25
      %p32 = scmp.eq.s32.totalorder %s16, 1
      %p33 = por %p31, %p32
      %p34 = scmp.ne.s32.totalorder %s26, %s29
      %p35 = scmp.eq.s32.totalorder %s16, 0
      %p36 = por %p34, %p35
      %p37 = scmp.ne.s32.totalorder %s26, %s29
      %p38 = scmp.eq.s32.totalorder %s21, 1
      %p39 = por %p37, %p38
      %p40 = scmp.ne.s32.totalorder %s29, %s30
      %p41 = scmp.eq.s32.totalorder %s21, 0
      %p42 = por %p40, %p41
      %p43 = scmp.ne.s32.totalorder %s29, %s30
      %p44 = scmp.eq.s32.totalorder %s22, 1
      %p45 = por %p43, %p44
      %p47 = scmp.ne.s32.totalorder %s30, %s46
      %p48 = scmp.eq.s32.totalorder %s22, 0
      %p49 = por %p47, %p48
      %s51 = sadd.s32 %s50, 1
      %p54 = scmp.eq.s32.totalorder %s16, 1
      %p55 = scmp.ne.s32.totalorder %s50, %s52
      %p56 = scmp.eq.s32.totalorder %s16, 0
      %p57 = por %p55, %p56
      %p58 = scmp.ne.s32.totalorder %s50, %s52
      %p59 = scmp.eq.s32.totalorder %s21, 1
      %p60 = por %p58, %p59
      %p61 = scmp.ne.s32.totalorder %s52, %s53
      %p62 = scmp.eq.s32.totalorder %s21, 0
      %p63 = por %p61, %p62
      %p64 = scmp.ne.s32.totalorder %s52, %s53
      %p65 = scmp.eq.s32.totalorder %s22, 1
      %p66 = por %p64, %p65
      %p68 = scmp.ne.s32.totalorder %s53, %s67
      %p69 = scmp.eq.s32.totalorder %s22, 0
      %p70 = por %p68, %p69
      %s72 = sadd.s32 %s71, 1
      %p75 = scmp.eq.s32.totalorder %s16, 1
      %p76 = scmp.ne.s32.totalorder %s71, %s73
      %p77 = scmp.eq.s32.totalorder %s16, 0
      %p78 = por %p76, %p77
      %p79 = scmp.ne.s32.totalorder %s71, %s73
      %p80 = scmp.eq.s32.totalorder %s21, 1
      %p81 = por %p79, %p80
      %p82 = scmp.ne.s32.totalorder %s73, %s74
      %p83 = scmp.eq.s32.totalorder %s21, 0
      %p84 = por %p82, %p83
      %p85 = scmp.ne.s32.totalorder %s73, %s74
      %p86 = scmp.eq.s32.totalorder %s22, 1
      %p87 = por %p85, %p86
      %p89 = scmp.ne.s32.totalorder %s74, %s88
      %p90 = scmp.eq.s32.totalorder %s22, 0
      %p91 = por %p89, %p90
      %s92 = ssub.s32 %s16, %s23
      %p93 = scmp.eq.s32.totalorder %s92, 0
      %s95 = sadd.s32 %s94, 1
      %s96 = scalar_select %p93, %s94, %s95
      %p99 = pneg %p93
      %p100 = scmp.eq.s32.totalorder %s16, 1
      %p101 = por %p99, %p100
      %p102 = scmp.ne.s32.totalorder %s94, %s97
      %p103 = scmp.eq.s32.totalorder %s16, 0
      %p104 = por %p102, %p103
      %p105 = scmp.ne.s32.totalorder %s94, %s97
      %p106 = scmp.eq.s32.totalorder %s21, 1
      %p107 = por %p105, %p106
      %p108 = scmp.ne.s32.totalorder %s97, %s98
      %p109 = scmp.eq.s32.totalorder %s21, 0
      %p110 = por %p108, %p109
      %p111 = scmp.ne.s32.totalorder %s97, %s98
      %p112 = scmp.eq.s32.totalorder %s22, 1
      %p113 = por %p111, %p112
      %p115 = scmp.ne.s32.totalorder %s98, %s114
      %p116 = scmp.eq.s32.totalorder %s22, 0
      %p117 = por %p115, %p116
      %p118 = scmp.le.s32.totalorder 1, %s16
      %p119 = scmp.lt.s32.totalorder %s16, 3
      %p120 = pnand %p118, %p119
      %p121 = pneg %p120
      // Predicated region
      $region9: #{tpu_custom_call.1} parent=5 // pred_check
        _
      $region10: #{tpu_custom_call.1} parent=5 // pred_check_branch
        %123 = sbr.rel (%p120) target = $region12
      $region11: #{tpu_custom_call.1} parent=5 // pred_region
        %s124 = ssub.s32 %s16, 1
        // Predicated region
        $region13: #{tpu_custom_call.1} parent=11 // pred_check
          %p125 = pneg %p63
        $region14: #{tpu_custom_call.1} parent=11 // pred_check_branch
          %127 = sbr.rel (%p125) target = $region16
        $region15: #{tpu_custom_call.1} parent=11 // pred_region
          %s129 = ssub.s32 12288, 12288
          %130 = vsyncadd [#allocation7], %s129
          %s131 = sshll.u32 [#allocation6], 4
          %s132 = int_to_ptr.vmem [resolvable:$true] %s131
          %137 = dma.hbm_to_vmem [thread:$0]  %s1, 12288, %s132, [#allocation7], 768, 768, 48
        $region16: #{tpu_custom_call.1} parent=11 // pred_fallthru
          _
        // Predicated region
        $region17: #{tpu_custom_call.1} parent=11 // pred_check
          %p138 = pneg %p84
        $region18: #{tpu_custom_call.1} parent=11 // pred_check_branch
          %140 = sbr.rel (%p138) target = $region20
        $region19: #{tpu_custom_call.1} parent=11 // pred_region
          %s142 = ssub.s32 4096, 4096
          %143 = vsyncadd [#allocation7], %s142
          %s144 = sshll.u32 [#allocation8], 4
          %s145 = int_to_ptr.vmem [resolvable:$true] %s144
          %150 = dma.hbm_to_vmem [thread:$0]  %s2, 4096, %s145, [#allocation7], 128, 128, 8
        $region20: #{tpu_custom_call.1} parent=11 // pred_fallthru
          _
      $region12: #{tpu_custom_call.1} parent=5 // pred_fallthru
        _
      %p151 = scmp.lt.s32.totalorder %s16, 2
      // Predicated region
      $region21: #{tpu_custom_call.1} parent=5 // pred_check
        %p152 = pneg %p151
      $region22: #{tpu_custom_call.1} parent=5 // pred_check_branch
        %154 = sbr.rel (%p152) target = $region24
      $region23: #{tpu_custom_call.1} parent=5 // pred_region
        // Predicated region
        $region25: #{tpu_custom_call.1} parent=23 // pred_check
          %p155 = pneg %p36
        $region26: #{tpu_custom_call.1} parent=23 // pred_check_branch
          %157 = sbr.rel (%p155) target = $region28
        $region27: #{tpu_custom_call.1} parent=23 // pred_region
          %s158 = sand.u32 %s26, 1
          %s159 = scalar_lea.sflag [#allocation4], %s158
          %s160 = sand.u32 %s26, 1
          %s161 = smul.addr %s160, 8
          %s162 = scalar_lea.vmem [#allocation3], %s161
          %s164 = ssub.s32 128, 128
          %165 = vsyncadd %s159, %s164
          %s166 = smul.addr %s16, 128
          %s167 = scalar_lea.hbm %s0, %s166
          %s169 = sshll.u32 %s162, 4
          %s170 = int_to_ptr.vmem [resolvable:$true] %s169
          %172 = dma.hbm_to_vmem [thread:$0]  %s167, 128, %s170, %s159
        $region28: #{tpu_custom_call.1} parent=23 // pred_fallthru
          _
      $region24: #{tpu_custom_call.1} parent=5 // pred_fallthru
        _
      %p173 = scmp.le.s32.totalorder 1, %s16
      %p174 = scmp.lt.s32.totalorder %s16, 3
      %p175 = pnand %p173, %p174
      %p176 = pneg %p175
      // Predicated region
      $region29: #{tpu_custom_call.1} parent=5 // pred_check
        _
      $region30: #{tpu_custom_call.1} parent=5 // pred_check_branch
        %178 = sbr.rel (%p175) target = $region32
      $region31: #{tpu_custom_call.1} parent=5 // pred_region
        %s179 = ssub.s32 %s16, 1
        %s180 = sand.u32 %s29, 1
        %s181 = scalar_lea.sflag [#allocation4], %s180
        %s182 = sand.u32 %s29, 1
        %s183 = smul.addr %s182, 8
        %s184 = scalar_lea.vmem [#allocation3], %s183
        // Predicated region
        $region33: #{tpu_custom_call.1} parent=31 // pred_check
          %p185 = pneg %p42
        $region34: #{tpu_custom_call.1} parent=31 // pred_check_branch
          %187 = sbr.rel (%p185) target = $region36
        $region35: #{tpu_custom_call.1} parent=31 // pred_region
          %188 = dma.done %s181, 128
        $region36: #{tpu_custom_call.1} parent=31 // pred_fallthru
          _
        // Predicated region
        $region37: #{tpu_custom_call.1} parent=31 // pred_check
          %p189 = pneg %p63
        $region38: #{tpu_custom_call.1} parent=31 // pred_check_branch
          %191 = sbr.rel (%p189) target = $region40
        $region39: #{tpu_custom_call.1} parent=31 // pred_region
          %192 = dma.done [#allocation7], 12288
        $region40: #{tpu_custom_call.1} parent=31 // pred_fallthru
          _
        // Predicated region
        $region41: #{tpu_custom_call.1} parent=31 // pred_check
          %p193 = pneg %p84
        $region42: #{tpu_custom_call.1} parent=31 // pred_check_branch
          %195 = sbr.rel (%p193) target = $region44
        $region43: #{tpu_custom_call.1} parent=31 // pred_region
          %196 = dma.done [#allocation7], 4096
        $region44: #{tpu_custom_call.1} parent=31 // pred_fallthru
          _
        %s197 = sand.u32 %s29, 1
        %s198 = scalar_lea.sflag [#allocation4], %s197
        %s199 = sand.u32 %s29, 1
        %s200 = smul.addr %s199, 8
        %s201 = scalar_lea.vmem [#allocation3], %s200
        %p202 = pneg %p42
        %p203 = pneg %p39
        %p204 = pneg %p63
        %p205 = pneg %p60
        %p206 = pneg %p84
        %p207 = pneg %p81
        %p208 = pneg %p110
        %p209 = pneg %p107
        %s210 = sand.u32 %s97, 1
        %s211 = scalar_lea.sflag [#allocation5], %s210
        %s212 = sand.u32 %s97, 1
        %s213 = smul.addr %s212, 8
        %s214 = scalar_lea.vmem [#allocation9], %s213
        %v215 = vld [vmem:[%s184] sm:$0xff]
        %v216 = vld [vmem:[#allocation6] sm:$0xff]
        %v217 = vld [vmem:[#allocation6 + $0x8] sm:$0xff]
        %v218 = vld [vmem:[#allocation6 + $0x10] sm:$0xff]
        %v219 = vld [vmem:[#allocation6 + $0x18] sm:$0xff]
        %v220 = vld [vmem:[#allocation6 + $0x20] sm:$0xff]
        %v221 = vld [vmem:[#allocation6 + $0x28] sm:$0xff]
        %v222 = vld [vmem:[#allocation6 + $0x30] sm:$0xff]
        %v223 = vld [vmem:[#allocation6 + $0x38] sm:$0xff]
        %v224 = vld [vmem:[#allocation6 + $0x40] sm:$0xff]
        %v225 = vld [vmem:[#allocation6 + $0x48] sm:$0xff]
        %v226 = vld [vmem:[#allocation6 + $0x50] sm:$0xff]
        %v227 = vld [vmem:[#allocation6 + $0x58] sm:$0xff]
        %v228 = vld [vmem:[#allocation6 + $0x60] sm:$0xff]
        %v229 = vld [vmem:[#allocation6 + $0x68] sm:$0xff]
        %v230 = vld [vmem:[#allocation6 + $0x70] sm:$0xff]
        %v231 = vld [vmem:[#allocation6 + $0x78] sm:$0xff]
        %v232 = vld [vmem:[#allocation6 + $0x80] sm:$0xff]
        %v233 = vld [vmem:[#allocation6 + $0x88] sm:$0xff]
        %v234 = vld [vmem:[#allocation6 + $0x90] sm:$0xff]
        %v235 = vld [vmem:[#allocation6 + $0x98] sm:$0xff]
        %v236 = vld [vmem:[#allocation6 + $0xa0] sm:$0xff]
        %v237 = vld [vmem:[#allocation6 + $0xa8] sm:$0xff]
        %v238 = vld [vmem:[#allocation6 + $0xb0] sm:$0xff]
        %v239 = vld [vmem:[#allocation6 + $0xb8] sm:$0xff]
        %v240 = vld [vmem:[#allocation6 + $0xc0] sm:$0xff]
        %v241 = vld [vmem:[#allocation6 + $0xc8] sm:$0xff]
        %v242 = vld [vmem:[#allocation6 + $0xd0] sm:$0xff]
        %v243 = vld [vmem:[#allocation6 + $0xd8] sm:$0xff]
        %v244 = vld [vmem:[#allocation6 + $0xe0] sm:$0xff]
        %v245 = vld [vmem:[#allocation6 + $0xe8] sm:$0xff]
        %v246 = vld [vmem:[#allocation6 + $0xf0] sm:$0xff]
        %v247 = vld [vmem:[#allocation6 + $0xf8] sm:$0xff]
        %v248 = vld [vmem:[#allocation6 + $0x100] sm:$0xff]
        %v249 = vld [vmem:[#allocation6 + $0x108] sm:$0xff]
        %v250 = vld [vmem:[#allocation6 + $0x110] sm:$0xff]
        %v251 = vld [vmem:[#allocation6 + $0x118] sm:$0xff]
        %v252 = vld [vmem:[#allocation6 + $0x120] sm:$0xff]
        %v253 = vld [vmem:[#allocation6 + $0x128] sm:$0xff]
        %v254 = vld [vmem:[#allocation6 + $0x130] sm:$0xff]
        %v255 = vld [vmem:[#allocation6 + $0x138] sm:$0xff]
        %v256 = vld [vmem:[#allocation6 + $0x140] sm:$0xff]
        %v257 = vld [vmem:[#allocation6 + $0x148] sm:$0xff]
        %v258 = vld [vmem:[#allocation6 + $0x150] sm:$0xff]
        %v259 = vld [vmem:[#allocation6 + $0x158] sm:$0xff]
        %v260 = vld [vmem:[#allocation6 + $0x160] sm:$0xff]
        %v261 = vld [vmem:[#allocation6 + $0x168] sm:$0xff]
        %v262 = vld [vmem:[#allocation6 + $0x170] sm:$0xff]
        %v263 = vld [vmem:[#allocation6 + $0x178] sm:$0xff]
        %v264 = vld [vmem:[#allocation6 + $0x180] sm:$0xff]
        %v265 = vld [vmem:[#allocation6 + $0x188] sm:$0xff]
        %v266 = vld [vmem:[#allocation6 + $0x190] sm:$0xff]
        %v267 = vld [vmem:[#allocation6 + $0x198] sm:$0xff]
        %v268 = vld [vmem:[#allocation6 + $0x1a0] sm:$0xff]
        %v269 = vld [vmem:[#allocation6 + $0x1a8] sm:$0xff]
        %v270 = vld [vmem:[#allocation6 + $0x1b0] sm:$0xff]
        %v271 = vld [vmem:[#allocation6 + $0x1b8] sm:$0xff]
        %v272 = vld [vmem:[#allocation6 + $0x1c0] sm:$0xff]
        %v273 = vld [vmem:[#allocation6 + $0x1c8] sm:$0xff]
        %v274 = vld [vmem:[#allocation6 + $0x1d0] sm:$0xff]
        %v275 = vld [vmem:[#allocation6 + $0x1d8] sm:$0xff]
        %v276 = vld [vmem:[#allocation6 + $0x1e0] sm:$0xff]
        %v277 = vld [vmem:[#allocation6 + $0x1e8] sm:$0xff]
        %v278 = vld [vmem:[#allocation6 + $0x1f0] sm:$0xff]
        %v279 = vld [vmem:[#allocation6 + $0x1f8] sm:$0xff]
        %v280 = vld [vmem:[#allocation6 + $0x200] sm:$0xff]
        %v281 = vld [vmem:[#allocation6 + $0x208] sm:$0xff]
        %v282 = vld [vmem:[#allocation6 + $0x210] sm:$0xff]
        %v283 = vld [vmem:[#allocation6 + $0x218] sm:$0xff]
        %v284 = vld [vmem:[#allocation6 + $0x220] sm:$0xff]
        %v285 = vld [vmem:[#allocation6 + $0x228] sm:$0xff]
        %v286 = vld [vmem:[#allocation6 + $0x230] sm:$0xff]
        %v287 = vld [vmem:[#allocation6 + $0x238] sm:$0xff]
        %v288 = vld [vmem:[#allocation6 + $0x240] sm:$0xff]
        %v289 = vld [vmem:[#allocation6 + $0x248] sm:$0xff]
        %v290 = vld [vmem:[#allocation6 + $0x250] sm:$0xff]
        %v291 = vld [vmem:[#allocation6 + $0x258] sm:$0xff]
        %v292 = vld [vmem:[#allocation6 + $0x260] sm:$0xff]
        %v293 = vld [vmem:[#allocation6 + $0x268] sm:$0xff]
        %v294 = vld [vmem:[#allocation6 + $0x270] sm:$0xff]
        %v295 = vld [vmem:[#allocation6 + $0x278] sm:$0xff]
        %v296 = vld [vmem:[#allocation6 + $0x280] sm:$0xff]
        %v297 = vld [vmem:[#allocation6 + $0x288] sm:$0xff]
        %v298 = vld [vmem:[#allocation6 + $0x290] sm:$0xff]
        %v299 = vld [vmem:[#allocation6 + $0x298] sm:$0xff]
        %v300 = vld [vmem:[#allocation6 + $0x2a0] sm:$0xff]
        %v301 = vld [vmem:[#allocation6 + $0x2a8] sm:$0xff]
        %v302 = vld [vmem:[#allocation6 + $0x2b0] sm:$0xff]
        %v303 = vld [vmem:[#allocation6 + $0x2b8] sm:$0xff]
        %v304 = vld [vmem:[#allocation6 + $0x2c0] sm:$0xff]
        %v305 = vld [vmem:[#allocation6 + $0x2c8] sm:$0xff]
        %v306 = vld [vmem:[#allocation6 + $0x2d0] sm:$0xff]
        %v307 = vld [vmem:[#allocation6 + $0x2d8] sm:$0xff]
        %v308 = vld [vmem:[#allocation6 + $0x2e0] sm:$0xff]
        %v309 = vld [vmem:[#allocation6 + $0x2e8] sm:$0xff]
        %v310 = vld [vmem:[#allocation6 + $0x2f0] sm:$0xff]
        %v311 = vld [vmem:[#allocation6 + $0x2f8] sm:$0xff]
        %312 = vmatprep.subr.mxu0 %v217
        %313 = vmatpush1.msra.mxu0 %v216
        %314 = vmatprep.subr.mxu0 %v223
        %315 = vmatpush1.msra.mxu0 %v222
        %316 = vmatprep.subr.mxu0 %v229
        %317 = vmatpush1.msra.mxu0 %v228
        %318 = vmatprep.subr.mxu0 %v235
        %319 = vmatpush1.msra.mxu0 %v234
        %320 = vmatprep.subr.mxu0 %v241
        %321 = vmatpush1.msra.mxu0 %v240
        %322 = vmatprep.subr.mxu0 %v247
        %323 = vmatpush1.msra.mxu0 %v246
        %324 = vmatprep.subr.mxu0 %v253
        %325 = vmatpush1.msra.mxu0 %v252
        %326 = vmatprep.subr.mxu0 %v259
        %327 = vmatpush1.msra.mxu0 %v258
        %328 = vmatprep.subr.mxu0 %v265
        %329 = vmatpush1.msra.mxu0 %v264
        %330 = vmatprep.subr.mxu0 %v271
        %331 = vmatpush1.msra.mxu0 %v270
        %332 = vmatprep.subr.mxu0 %v277
        %333 = vmatpush1.msra.mxu0 %v276
        %334 = vmatprep.subr.mxu0 %v283
        %335 = vmatpush1.msra.mxu0 %v282
        %336 = vmatprep.subr.mxu0 %v289
        %337 = vmatpush1.msra.mxu0 %v288
        %338 = vmatprep.subr.mxu0 %v295
        %339 = vmatpush1.msra.mxu0 %v294
        %340 = vmatprep.subr.mxu0 %v301
        %341 = vmatpush1.msra.mxu0 %v300
        %342 = vmatprep.subr.mxu0 %v307
        %343 = vmatpush1.msra.mxu0 %v306
        %344 = vmatprep.subr.mxu0 0.0
        %345 = vmatpush1.msra.mxu0 0.0
        %346 = vmatprep.subr.mxu0 0.0
        %347 = vmatpush1.msra.mxu0 0.0
        %348 = vmatprep.subr.mxu0 0.0
        %349 = vmatpush1.msra.mxu0 0.0
        %350 = vmatprep.subr.mxu0 0.0
        %351 = vmatpush1.msra.mxu0 0.0
        %352 = vmatprep.subr.mxu0 0.0
        %353 = vmatpush1.msra.mxu0 0.0
        %354 = vmatprep.subr.mxu0 0.0
        %355 = vmatpush1.msra.mxu0 0.0
        %356 = vmatprep.subr.mxu0 0.0
        %357 = vmatpush1.msra.mxu0 0.0
        %358 = vmatprep.subr.mxu0 0.0
        %359 = vmatpush1.msra.mxu0 0.0
        %360 = vmatprep.subr.mxu0 0.0
        %361 = vmatpush1.msra.mxu0 0.0
        %362 = vmatprep.subr.mxu0 0.0
        %363 = vmatpush1.msra.mxu0 0.0
        %364 = vmatprep.subr.mxu0 0.0
        %365 = vmatpush1.msra.mxu0 0.0
        %366 = vmatprep.subr.mxu0 0.0
        %367 = vmatpush1.msra.mxu0 0.0
        %368 = vmatprep.subr.mxu0 0.0
        %369 = vmatpush1.msra.mxu0 0.0
        %370 = vmatprep.subr.mxu0 0.0
        %371 = vmatpush1.msra.mxu0 0.0
        %372 = vmatprep.subr.mxu0 0.0
        %373 = vmatpush1.msra.mxu0 0.0
        %374 = vmatprep.subr.mxu0 0.0
        %375 = vmatpush1.msra.mxu0 0.0
        %376 = vmatprep.mubr.f32.mxu0 0.0
        %377 = vmatmul.mubr.f32.gmra.mrb[0].mxu0 %v215
        %v378 = vpop.f32.mrb[0].mxu0
        %v379 = vadd.f32 0.0, %v378
        %v380 = vpop.f32.mrb[0].mxu0
        %v381 = vadd.f32 0.0, %v380
        %382 = vdwg.mxu0
        %383 = vmatprep.subr.mxu0 %v219
        %384 = vmatpush1.msra.mxu0 %v218
        %385 = vmatprep.subr.mxu0 %v225
        %386 = vmatpush1.msra.mxu0 %v224
        %387 = vmatprep.subr.mxu0 %v231
        %388 = vmatpush1.msra.mxu0 %v230
        %389 = vmatprep.subr.mxu0 %v237
        %390 = vmatpush1.msra.mxu0 %v236
        %391 = vmatprep.subr.mxu0 %v243
        %392 = vmatpush1.msra.mxu0 %v242
        %393 = vmatprep.subr.mxu0 %v249
        %394 = vmatpush1.msra.mxu0 %v248
        %395 = vmatprep.subr.mxu0 %v255
        %396 = vmatpush1.msra.mxu0 %v254
        %397 = vmatprep.subr.mxu0 %v261
        %398 = vmatpush1.msra.mxu0 %v260
        %399 = vmatprep.subr.mxu0 %v267
        %400 = vmatpush1.msra.mxu0 %v266
        %401 = vmatprep.subr.mxu0 %v273
        %402 = vmatpush1.msra.mxu0 %v272
        %403 = vmatprep.subr.mxu0 %v279
        %404 = vmatpush1.msra.mxu0 %v278
        %405 = vmatprep.subr.mxu0 %v285
        %406 = vmatpush1.msra.mxu0 %v284
        %407 = vmatprep.subr.mxu0 %v291
        %408 = vmatpush1.msra.mxu0 %v290
        %409 = vmatprep.subr.mxu0 %v297
        %410 = vmatpush1.msra.mxu0 %v296
        %411 = vmatprep.subr.mxu0 %v303
        %412 = vmatpush1.msra.mxu0 %v302
        %413 = vmatprep.subr.mxu0 %v309
        %414 = vmatpush1.msra.mxu0 %v308
        %415 = vmatprep.subr.mxu0 0.0
        %416 = vmatpush1.msra.mxu0 0.0
        %417 = vmatprep.subr.mxu0 0.0
        %418 = vmatpush1.msra.mxu0 0.0
        %419 = vmatprep.subr.mxu0 0.0
        %420 = vmatpush1.msra.mxu0 0.0
        %421 = vmatprep.subr.mxu0 0.0
        %422 = vmatpush1.msra.mxu0 0.0
        %423 = vmatprep.subr.mxu0 0.0
        %424 = vmatpush1.msra.mxu0 0.0
        %425 = vmatprep.subr.mxu0 0.0
        %426 = vmatpush1.msra.mxu0 0.0
        %427 = vmatprep.subr.mxu0 0.0
        %428 = vmatpush1.msra.mxu0 0.0
        %429 = vmatprep.subr.mxu0 0.0
        %430 = vmatpush1.msra.mxu0 0.0
        %431 = vmatprep.subr.mxu0 0.0
        %432 = vmatpush1.msra.mxu0 0.0
        %433 = vmatprep.subr.mxu0 0.0
        %434 = vmatpush1.msra.mxu0 0.0
        %435 = vmatprep.subr.mxu0 0.0
        %436 = vmatpush1.msra.mxu0 0.0
        %437 = vmatprep.subr.mxu0 0.0
        %438 = vmatpush1.msra.mxu0 0.0
        %439 = vmatprep.subr.mxu0 0.0
        %440 = vmatpush1.msra.mxu0 0.0
        %441 = vmatprep.subr.mxu0 0.0
        %442 = vmatpush1.msra.mxu0 0.0
        %443 = vmatprep.subr.mxu0 0.0
        %444 = vmatpush1.msra.mxu0 0.0
        %445 = vmatprep.subr.mxu0 0.0
        %446 = vmatpush1.msra.mxu0 0.0
        %447 = vmatprep.mubr.f32.mxu0 0.0
        %448 = vmatmul.mubr.f32.gmra.mrb[0].mxu0 %v215
        %v449 = vpop.f32.mrb[0].mxu0
        %v450 = vadd.f32 0.0, %v449
        %v451 = vpop.f32.mrb[0].mxu0
        %v452 = vadd.f32 0.0, %v451
        %453 = vdwg.mxu0
        %454 = vmatprep.subr.mxu0 %v221
        %455 = vmatpush1.msra.mxu0 %v220
        %456 = vmatprep.subr.mxu0 %v227
        %457 = vmatpush1.msra.mxu0 %v226
        %458 = vmatprep.subr.mxu0 %v233
        %459 = vmatpush1.msra.mxu0 %v232
        %460 = vmatprep.subr.mxu0 %v239
        %461 = vmatpush1.msra.mxu0 %v238
        %462 = vmatprep.subr.mxu0 %v245
        %463 = vmatpush1.msra.mxu0 %v244
        %464 = vmatprep.subr.mxu0 %v251
        %465 = vmatpush1.msra.mxu0 %v250
        %466 = vmatprep.subr.mxu0 %v257
        %467 = vmatpush1.msra.mxu0 %v256
        %468 = vmatprep.subr.mxu0 %v263
        %469 = vmatpush1.msra.mxu0 %v262
        %470 = vmatprep.subr.mxu0 %v269
        %471 = vmatpush1.msra.mxu0 %v268
        %472 = vmatprep.subr.mxu0 %v275
        %473 = vmatpush1.msra.mxu0 %v274
        %474 = vmatprep.subr.mxu0 %v281
        %475 = vmatpush1.msra.mxu0 %v280
        %476 = vmatprep.subr.mxu0 %v287
        %477 = vmatpush1.msra.mxu0 %v286
        %478 = vmatprep.subr.mxu0 %v293
        %479 = vmatpush1.msra.mxu0 %v292
        %480 = vmatprep.subr.mxu0 %v299
        %481 = vmatpush1.msra.mxu0 %v298
        %482 = vmatprep.subr.mxu0 %v305
        %483 = vmatpush1.msra.mxu0 %v304
        %484 = vmatprep.subr.mxu0 %v311
        %485 = vmatpush1.msra.mxu0 %v310
        %486 = vmatprep.subr.mxu0 0.0
        %487 = vmatpush1.msra.mxu0 0.0
        %488 = vmatprep.subr.mxu0 0.0
        %489 = vmatpush1.msra.mxu0 0.0
        %490 = vmatprep.subr.mxu0 0.0
        %491 = vmatpush1.msra.mxu0 0.0
        %492 = vmatprep.subr.mxu0 0.0
        %493 = vmatpush1.msra.mxu0 0.0
        %494 = vmatprep.subr.mxu0 0.0
        %495 = vmatpush1.msra.mxu0 0.0
        %496 = vmatprep.subr.mxu0 0.0
        %497 = vmatpush1.msra.mxu0 0.0
        %498 = vmatprep.subr.mxu0 0.0
        %499 = vmatpush1.msra.mxu0 0.0
        %500 = vmatprep.subr.mxu0 0.0
        %501 = vmatpush1.msra.mxu0 0.0
        %502 = vmatprep.subr.mxu0 0.0
        %503 = vmatpush1.msra.mxu0 0.0
        %504 = vmatprep.subr.mxu0 0.0
        %505 = vmatpush1.msra.mxu0 0.0
        %506 = vmatprep.subr.mxu0 0.0
        %507 = vmatpush1.msra.mxu0 0.0
        %508 = vmatprep.subr.mxu0 0.0
        %509 = vmatpush1.msra.mxu0 0.0
        %510 = vmatprep.subr.mxu0 0.0
        %511 = vmatpush1.msra.mxu0 0.0
        %512 = vmatprep.subr.mxu0 0.0
        %513 = vmatpush1.msra.mxu0 0.0
        %514 = vmatprep.subr.mxu0 0.0
        %515 = vmatpush1.msra.mxu0 0.0
        %516 = vmatprep.subr.mxu0 0.0
        %517 = vmatpush1.msra.mxu0 0.0
        %518 = vmatprep.mubr.f32.mxu0 0.0
        %519 = vmatmul.mubr.f32.gmra.mrb[0].mxu0 %v215
        %v520 = vpop.f32.mrb[0].mxu0
        %v521 = vadd.f32 0.0, %v520
        %v522 = vpop.f32.mrb[0].mxu0
        %v523 = vadd.f32 0.0, %v522
        %524 = vdwg.mxu0
        %v525 = vmul.f32 %v379, 0.25
        %526 = vmatprep.subr.mxu0 0.0
        %527 = vmatpush1.xpose.msra.mxu0 %v381
        %528 = vmatprep.subr.mxu0 0.0
        %529 = vmatpush1.xpose.msra.mxu0 0.0
        %530 = vmatprep.subr.mxu0 0.0
        %531 = vmatpush1.xpose.msra.mxu0 0.0
        %532 = vmatprep.subr.mxu0 0.0
        %533 = vmatpush1.xpose.msra.mxu0 0.0
        %534 = vmatprep.subr.mxu0 0.0
        %535 = vmatpush1.xpose.msra.mxu0 0.0
        %536 = vmatprep.subr.mxu0 0.0
        %537 = vmatpush1.xpose.msra.mxu0 0.0
        %538 = vmatprep.subr.mxu0 0.0
        %539 = vmatpush1.xpose.msra.mxu0 0.0
        %540 = vmatprep.subr.mxu0 0.0
        %541 = vmatpush1.xpose.msra.mxu0 0.0
        %542 = vmatprep.subr.mxu0 0.0
        %543 = vmatpush1.xpose.msra.mxu0 0.0
        %544 = vmatprep.subr.mxu0 0.0
        %545 = vmatpush1.xpose.msra.mxu0 0.0
        %546 = vmatprep.subr.mxu0 0.0
        %547 = vmatpush1.xpose.msra.mxu0 0.0
        %548 = vmatprep.subr.mxu0 0.0
        %549 = vmatpush1.xpose.msra.mxu0 0.0
        %550 = vmatprep.subr.mxu0 0.0
        %551 = vmatpush1.xpose.msra.mxu0 0.0
        %552 = vmatprep.subr.mxu0 0.0
        %553 = vmatpush1.xpose.msra.mxu0 0.0
        %554 = vmatprep.subr.mxu0 0.0
        %555 = vmatpush1.xpose.msra.mxu0 0.0
        %556 = vmatprep.subr.mxu0 0.0
        %557 = vmatpush1.xpose.msra.mxu0 0.0
        %558 = vmatprep.subr.mxu0 0.0
        %559 = vmatpush1.xpose.msra.mxu0 0.0
        %560 = vmatprep.subr.mxu0 0.0
        %561 = vmatpush1.xpose.msra.mxu0 0.0
        %562 = vmatprep.subr.mxu0 0.0
        %563 = vmatpush1.xpose.msra.mxu0 0.0
        %564 = vmatprep.subr.mxu0 0.0
        %565 = vmatpush1.xpose.msra.mxu0 0.0
        %566 = vmatprep.subr.mxu0 0.0
        %567 = vmatpush1.xpose.msra.mxu0 0.0
        %568 = vmatprep.subr.mxu0 0.0
        %569 = vmatpush1.xpose.msra.mxu0 0.0
        %570 = vmatprep.subr.mxu0 0.0
        %571 = vmatpush1.xpose.msra.mxu0 0.0
        %572 = vmatprep.subr.mxu0 0.0
        %573 = vmatpush1.xpose.msra.mxu0 0.0
        %574 = vmatprep.subr.mxu0 0.0
        %575 = vmatpush1.xpose.msra.mxu0 0.0
        %576 = vmatprep.subr.mxu0 0.0
        %577 = vmatpush1.xpose.msra.mxu0 0.0
        %578 = vmatprep.subr.mxu0 0.0
        %579 = vmatpush1.xpose.msra.mxu0 0.0
        %580 = vmatprep.subr.mxu0 0.0
        %581 = vmatpush1.xpose.msra.mxu0 0.0
        %582 = vmatprep.subr.mxu0 0.0
        %583 = vmatpush1.xpose.msra.mxu0 0.0
        %584 = vmatprep.subr.mxu0 0.0
        %585 = vmatpush1.xpose.msra.mxu0 0.0
        %586 = vmatprep.subr.mxu0 0.0
        %587 = vmatpush1.xpose.msra.mxu0 0.0
        %588 = vmatprep.subr.mxu0 0.0
        %589 = vmatpush1.xpose.msra.mxu0 0.0
        %590 = vmatprep.mubr.f32.mxu0 0.0
        %591 = vmatmul.mubr.f32.gmra.mrb[0].mxu0 %v525
        %v592 = vpop.f32.mrb[0].mxu0
        %v593 = vadd.f32 0.0, %v592
        %v594 = vpop.f32.mrb[0].mxu0
        %595 = vdwg.mxu0
        %vm596 = vcmask 64512
        %v597 = vsel %vm596, %v593, -inf
        %598 = vmax.xlane.f32.xlu0 %v597
        %v599 = vpop.xlane.xlu0 %598
        %v600 = vsub.f32 %v593, %v599
        %v601 = vmul.f32 %v600, 1.442695
        %v602 = vpow.pop %v601
        %v603 = vsel %vm596, %v602, 0.0
        %604 = vadd.xlane.f32.xlu0 %v603
        %v605 = vpop.xlane.xlu0 %604
        %v607 = vsel %vm596, %v602, 0
        %609 = vmatprep.subr.mxu0 0.0
        %610 = vmatpush1.msra.mxu0 %v450
        %611 = vmatprep.subr.mxu0 0.0
        %612 = vmatpush1.msra.mxu0 0.0
        %613 = vmatprep.subr.mxu0 0.0
        %614 = vmatpush1.msra.mxu0 0.0
        %615 = vmatprep.subr.mxu0 0.0
        %616 = vmatpush1.msra.mxu0 0.0
        %617 = vmatprep.subr.mxu0 0.0
        %618 = vmatpush1.msra.mxu0 0.0
        %619 = vmatprep.subr.mxu0 0.0
        %620 = vmatpush1.msra.mxu0 0.0
        %621 = vmatprep.subr.mxu0 0.0
        %622 = vmatpush1.msra.mxu0 0.0
        %623 = vmatprep.subr.mxu0 0.0
        %624 = vmatpush1.msra.mxu0 0.0
        %625 = vmatprep.subr.mxu0 0.0
        %626 = vmatpush1.msra.mxu0 0.0
        %627 = vmatprep.subr.mxu0 0.0
        %628 = vmatpush1.msra.mxu0 0.0
        %629 = vmatprep.subr.mxu0 0.0
        %630 = vmatpush1.msra.mxu0 0.0
        %631 = vmatprep.subr.mxu0 0.0
        %632 = vmatpush1.msra.mxu0 0.0
        %633 = vmatprep.subr.mxu0 0.0
        %634 = vmatpush1.msra.mxu0 0.0
        %635 = vmatprep.subr.mxu0 0.0
        %636 = vmatpush1.msra.mxu0 0.0
        %637 = vmatprep.subr.mxu0 0.0
        %638 = vmatpush1.msra.mxu0 0.0
        %639 = vmatprep.subr.mxu0 0.0
        %640 = vmatpush1.msra.mxu0 0.0
        %641 = vmatprep.subr.mxu0 0.0
        %642 = vmatpush1.msra.mxu0 0.0
        %643 = vmatprep.subr.mxu0 0.0
        %644 = vmatpush1.msra.mxu0 0.0
        %645 = vmatprep.subr.mxu0 0.0
        %646 = vmatpush1.msra.mxu0 0.0
        %647 = vmatprep.subr.mxu0 0.0
        %648 = vmatpush1.msra.mxu0 0.0
        %649 = vmatprep.subr.mxu0 0.0
        %650 = vmatpush1.msra.mxu0 0.0
        %651 = vmatprep.subr.mxu0 0.0
        %652 = vmatpush1.msra.mxu0 0.0
        %653 = vmatprep.subr.mxu0 0.0
        %654 = vmatpush1.msra.mxu0 0.0
        %655 = vmatprep.subr.mxu0 0.0
        %656 = vmatpush1.msra.mxu0 0.0
        %657 = vmatprep.subr.mxu0 0.0
        %658 = vmatpush1.msra.mxu0 0.0
        %659 = vmatprep.subr.mxu0 0.0
        %660 = vmatpush1.msra.mxu0 0.0
        %661 = vmatprep.subr.mxu0 0.0
        %662 = vmatpush1.msra.mxu0 0.0
        %663 = vmatprep.subr.mxu0 0.0
        %664 = vmatpush1.msra.mxu0 0.0
        %665 = vmatprep.subr.mxu0 0.0
        %666 = vmatpush1.msra.mxu0 0.0
        %667 = vmatprep.subr.mxu0 0.0
        %668 = vmatpush1.msra.mxu0 0.0
        %669 = vmatprep.subr.mxu0 0.0
        %670 = vmatpush1.msra.mxu0 0.0
        %671 = vmatprep.subr.mxu0 0.0
        %672 = vmatpush1.msra.mxu0 0.0
        %673 = vmatprep.mubr.f32.mxu0 0.0
        %674 = vmatmul.mubr.f32.gmra.mrb[0].mxu0 %v607
        %v675 = vpop.f32.mrb[0].mxu0
        %v676 = vadd.f32 0.0, %v675
        %v677 = vpop.f32.mrb[0].mxu0
        %678 = vdwg.mxu0
        %v679 = vrcp.pop %v605
        %v680 = vmul.f32 %v676, %v679
        %681 = vst [vmem:[#allocation2] sm:$0xff] %v680
        %v682 = vmul.f32 %v452, 0.25
        %683 = vmatprep.subr.mxu0 0.0
        %684 = vmatpush1.xpose.msra.mxu0 %v521
        %685 = vmatprep.subr.mxu0 0.0
        %686 = vmatpush1.xpose.msra.mxu0 0.0
        %687 = vmatprep.subr.mxu0 0.0
        %688 = vmatpush1.xpose.msra.mxu0 0.0
        %689 = vmatprep.subr.mxu0 0.0
        %690 = vmatpush1.xpose.msra.mxu0 0.0
        %691 = vmatprep.subr.mxu0 0.0
        %692 = vmatpush1.xpose.msra.mxu0 0.0
        %693 = vmatprep.subr.mxu0 0.0
        %694 = vmatpush1.xpose.msra.mxu0 0.0
        %695 = vmatprep.subr.mxu0 0.0
        %696 = vmatpush1.xpose.msra.mxu0 0.0
        %697 = vmatprep.subr.mxu0 0.0
        %698 = vmatpush1.xpose.msra.mxu0 0.0
        %699 = vmatprep.subr.mxu0 0.0
        %700 = vmatpush1.xpose.msra.mxu0 0.0
        %701 = vmatprep.subr.mxu0 0.0
        %702 = vmatpush1.xpose.msra.mxu0 0.0
        %703 = vmatprep.subr.mxu0 0.0
        %704 = vmatpush1.xpose.msra.mxu0 0.0
        %705 = vmatprep.subr.mxu0 0.0
        %706 = vmatpush1.xpose.msra.mxu0 0.0
        %707 = vmatprep.subr.mxu0 0.0
        %708 = vmatpush1.xpose.msra.mxu0 0.0
        %709 = vmatprep.subr.mxu0 0.0
        %710 = vmatpush1.xpose.msra.mxu0 0.0
        %711 = vmatprep.subr.mxu0 0.0
        %712 = vmatpush1.xpose.msra.mxu0 0.0
        %713 = vmatprep.subr.mxu0 0.0
        %714 = vmatpush1.xpose.msra.mxu0 0.0
        %715 = vmatprep.subr.mxu0 0.0
        %716 = vmatpush1.xpose.msra.mxu0 0.0
        %717 = vmatprep.subr.mxu0 0.0
        %718 = vmatpush1.xpose.msra.mxu0 0.0
        %719 = vmatprep.subr.mxu0 0.0
        %720 = vmatpush1.xpose.msra.mxu0 0.0
        %721 = vmatprep.subr.mxu0 0.0
        %722 = vmatpush1.xpose.msra.mxu0 0.0
        %723 = vmatprep.subr.mxu0 0.0
        %724 = vmatpush1.xpose.msra.mxu0 0.0
        %725 = vmatprep.subr.mxu0 0.0
        %726 = vmatpush1.xpose.msra.mxu0 0.0
        %727 = vmatprep.subr.mxu0 0.0
        %728 = vmatpush1.xpose.msra.mxu0 0.0
        %729 = vmatprep.subr.mxu0 0.0
        %730 = vmatpush1.xpose.msra.mxu0 0.0
        %731 = vmatprep.subr.mxu0 0.0
        %732 = vmatpush1.xpose.msra.mxu0 0.0
        %733 = vmatprep.subr.mxu0 0.0
        %734 = vmatpush1.xpose.msra.mxu0 0.0
        %735 = vmatprep.subr.mxu0 0.0
        %736 = vmatpush1.xpose.msra.mxu0 0.0
        %737 = vmatprep.subr.mxu0 0.0
        %738 = vmatpush1.xpose.msra.mxu0 0.0
        %739 = vmatprep.subr.mxu0 0.0
        %740 = vmatpush1.xpose.msra.mxu0 0.0
        %741 = vmatprep.subr.mxu0 0.0
        %742 = vmatpush1.xpose.msra.mxu0 0.0
        %743 = vmatprep.subr.mxu0 0.0
        %744 = vmatpush1.xpose.msra.mxu0 0.0
        %745 = vmatprep.subr.mxu0 0.0
        %746 = vmatpush1.xpose.msra.mxu0 0.0
        %747 = vmatprep.mubr.f32.mxu0 0.0
        %748 = vmatmul.mubr.f32.gmra.mrb[0].mxu0 %v682
        %v749 = vpop.f32.mrb[0].mxu0
        %v750 = vadd.f32 0.0, %v749
        %v751 = vpop.f32.mrb[0].mxu0
        %752 = vdwg.mxu0
        %v753 = vsel %vm596, %v750, -inf
        %754 = vmax.xlane.f32.xlu0 %v753
        %v755 = vpop.xlane.xlu0 %754
        %v756 = vsub.f32 %v750, %v755
        %v757 = vmul.f32 %v756, 1.442695
        %v758 = vpow.pop %v757
        %v759 = vsel %vm596, %v758, 0.0
        %760 = vadd.xlane.f32.xlu0 %v759
        %v761 = vpop.xlane.xlu0 %760
        %v763 = vsel %vm596, %v758, 0
        %765 = vmatprep.subr.mxu0 0.0
        %766 = vmatpush1.msra.mxu0 %v523
        %767 = vmatprep.subr.mxu0 0.0
        %768 = vmatpush1.msra.mxu0 0.0
        %769 = vmatprep.subr.mxu0 0.0
        %770 = vmatpush1.msra.mxu0 0.0
        %771 = vmatprep.subr.mxu0 0.0
        %772 = vmatpush1.msra.mxu0 0.0
        %773 = vmatprep.subr.mxu0 0.0
        %774 = vmatpush1.msra.mxu0 0.0
        %775 = vmatprep.subr.mxu0 0.0
        %776 = vmatpush1.msra.mxu0 0.0
        %777 = vmatprep.subr.mxu0 0.0
        %778 = vmatpush1.msra.mxu0 0.0
        %779 = vmatprep.subr.mxu0 0.0
        %780 = vmatpush1.msra.mxu0 0.0
        %781 = vmatprep.subr.mxu0 0.0
        %782 = vmatpush1.msra.mxu0 0.0
        %783 = vmatprep.subr.mxu0 0.0
        %784 = vmatpush1.msra.mxu0 0.0
        %785 = vmatprep.subr.mxu0 0.0
        %786 = vmatpush1.msra.mxu0 0.0
        %787 = vmatprep.subr.mxu0 0.0
        %788 = vmatpush1.msra.mxu0 0.0
        %789 = vmatprep.subr.mxu0 0.0
        %790 = vmatpush1.msra.mxu0 0.0
        %791 = vmatprep.subr.mxu0 0.0
        %792 = vmatpush1.msra.mxu0 0.0
        %793 = vmatprep.subr.mxu0 0.0
        %794 = vmatpush1.msra.mxu0 0.0
        %795 = vmatprep.subr.mxu0 0.0
        %796 = vmatpush1.msra.mxu0 0.0
        %797 = vmatprep.subr.mxu0 0.0
        %798 = vmatpush1.msra.mxu0 0.0
        %799 = vmatprep.subr.mxu0 0.0
        %800 = vmatpush1.msra.mxu0 0.0
        %801 = vmatprep.subr.mxu0 0.0
        %802 = vmatpush1.msra.mxu0 0.0
        %803 = vmatprep.subr.mxu0 0.0
        %804 = vmatpush1.msra.mxu0 0.0
        %805 = vmatprep.subr.mxu0 0.0
        %806 = vmatpush1.msra.mxu0 0.0
        %807 = vmatprep.subr.mxu0 0.0
        %808 = vmatpush1.msra.mxu0 0.0
        %809 = vmatprep.subr.mxu0 0.0
        %810 = vmatpush1.msra.mxu0 0.0
        %811 = vmatprep.subr.mxu0 0.0
        %812 = vmatpush1.msra.mxu0 0.0
        %813 = vmatprep.subr.mxu0 0.0
        %814 = vmatpush1.msra.mxu0 0.0
        %815 = vmatprep.subr.mxu0 0.0
        %816 = vmatpush1.msra.mxu0 0.0
        %817 = vmatprep.subr.mxu0 0.0
        %818 = vmatpush1.msra.mxu0 0.0
        %819 = vmatprep.subr.mxu0 0.0
        %820 = vmatpush1.msra.mxu0 0.0
        %821 = vmatprep.subr.mxu0 0.0
        %822 = vmatpush1.msra.mxu0 0.0
        %823 = vmatprep.subr.mxu0 0.0
        %824 = vmatpush1.msra.mxu0 0.0
        %825 = vmatprep.subr.mxu0 0.0
        %826 = vmatpush1.msra.mxu0 0.0
        %827 = vmatprep.subr.mxu0 0.0
        %828 = vmatpush1.msra.mxu0 0.0
        %829 = vmatprep.mubr.f32.mxu0 0.0
        %830 = vmatmul.mubr.f32.gmra.mrb[0].mxu0 %v763
        %v831 = vpop.f32.mrb[0].mxu0
        %v832 = vadd.f32 0.0, %v831
        %v833 = vpop.f32.mrb[0].mxu0
        %834 = vdwg.mxu0
        %v835 = vrcp.pop %v761
        %v836 = vmul.f32 %v832, %v835
        %837 = vst [vmem:[#allocation2 + $0x8] sm:$0xff] %v836
        %v838 = vld [vmem:[#allocation2] sm:$0xff]
        %v839 = vld [vmem:[#allocation2 + $0x8] sm:$0xff]
        %v840 = vld [vmem:[#allocation8] sm:$0xff]
        %v841 = vld [vmem:[#allocation8 + $0x8] sm:$0xff]
        %v842 = vld [vmem:[#allocation8 + $0x10] sm:$0xff]
        %v843 = vld [vmem:[#allocation8 + $0x18] sm:$0xff]
        %v844 = vld [vmem:[#allocation8 + $0x20] sm:$0xff]
        %v845 = vld [vmem:[#allocation8 + $0x28] sm:$0xff]
        %v846 = vld [vmem:[#allocation8 + $0x30] sm:$0xff]
        %v847 = vld [vmem:[#allocation8 + $0x38] sm:$0xff]
        %v848 = vld [vmem:[#allocation8 + $0x40] sm:$0xff]
        %v849 = vld [vmem:[#allocation8 + $0x48] sm:$0xff]
        %v850 = vld [vmem:[#allocation8 + $0x50] sm:$0xff]
        %v851 = vld [vmem:[#allocation8 + $0x58] sm:$0xff]
        %v852 = vld [vmem:[#allocation8 + $0x60] sm:$0xff]
        %v853 = vld [vmem:[#allocation8 + $0x68] sm:$0xff]
        %v854 = vld [vmem:[#allocation8 + $0x70] sm:$0xff]
        %v855 = vld [vmem:[#allocation8 + $0x78] sm:$0xff]
        %v856 = vld [vmem:[#allocation8 + $0x80] sm:$0xff]
        %v857 = vld [vmem:[#allocation8 + $0x88] sm:$0xff]
        %v858 = vld [vmem:[#allocation8 + $0x90] sm:$0xff]
        %v859 = vld [vmem:[#allocation8 + $0x98] sm:$0xff]
        %v860 = vld [vmem:[#allocation8 + $0xa0] sm:$0xff]
        %v861 = vld [vmem:[#allocation8 + $0xa8] sm:$0xff]
        %v862 = vld [vmem:[#allocation8 + $0xb0] sm:$0xff]
        %v863 = vld [vmem:[#allocation8 + $0xb8] sm:$0xff]
        %v864 = vld [vmem:[#allocation8 + $0xc0] sm:$0xff]
        %v865 = vld [vmem:[#allocation8 + $0xc8] sm:$0xff]
        %v866 = vld [vmem:[#allocation8 + $0xd0] sm:$0xff]
        %v867 = vld [vmem:[#allocation8 + $0xd8] sm:$0xff]
        %v868 = vld [vmem:[#allocation8 + $0xe0] sm:$0xff]
        %v869 = vld [vmem:[#allocation8 + $0xe8] sm:$0xff]
        %v870 = vld [vmem:[#allocation8 + $0xf0] sm:$0xff]
        %v871 = vld [vmem:[#allocation8 + $0xf8] sm:$0xff]
        %872 = vmatprep.subr.mxu0 0.0
        %873 = vmatpush1.msra.mxu0 %v840
        %874 = vmatprep.subr.mxu0 0.0
        %875 = vmatpush1.msra.mxu0 %v841
        %876 = vmatprep.subr.mxu0 0.0
        %877 = vmatpush1.msra.mxu0 %v842
        %878 = vmatprep.subr.mxu0 0.0
        %879 = vmatpush1.msra.mxu0 %v843
        %880 = vmatprep.subr.mxu0 0.0
        %881 = vmatpush1.msra.mxu0 %v844
        %882 = vmatprep.subr.mxu0 0.0
        %883 = vmatpush1.msra.mxu0 %v845
        %884 = vmatprep.subr.mxu0 0.0
        %885 = vmatpush1.msra.mxu0 %v846
        %886 = vmatprep.subr.mxu0 0.0
        %887 = vmatpush1.msra.mxu0 %v847
        %888 = vmatprep.subr.mxu0 0.0
        %889 = vmatpush1.msra.mxu0 %v848
        %890 = vmatprep.subr.mxu0 0.0
        %891 = vmatpush1.msra.mxu0 %v849
        %892 = vmatprep.subr.mxu0 0.0
        %893 = vmatpush1.msra.mxu0 %v850
        %894 = vmatprep.subr.mxu0 0.0
        %895 = vmatpush1.msra.mxu0 %v851
        %896 = vmatprep.subr.mxu0 0.0
        %897 = vmatpush1.msra.mxu0 %v852
        %898 = vmatprep.subr.mxu0 0.0
        %899 = vmatpush1.msra.mxu0 %v853
        %900 = vmatprep.subr.mxu0 0.0
        %901 = vmatpush1.msra.mxu0 %v854
        %902 = vmatprep.subr.mxu0 0.0
        %903 = vmatpush1.msra.mxu0 %v855
        %904 = vmatprep.subr.mxu0 0.0
        %905 = vmatpush1.msra.mxu0 %v856
        %906 = vmatprep.subr.mxu0 0.0
        %907 = vmatpush1.msra.mxu0 %v857
        %908 = vmatprep.subr.mxu0 0.0
        %909 = vmatpush1.msra.mxu0 %v858
        %910 = vmatprep.subr.mxu0 0.0
        %911 = vmatpush1.msra.mxu0 %v859
        %912 = vmatprep.subr.mxu0 0.0
        %913 = vmatpush1.msra.mxu0 %v860
        %914 = vmatprep.subr.mxu0 0.0
        %915 = vmatpush1.msra.mxu0 %v861
        %916 = vmatprep.subr.mxu0 0.0
        %917 = vmatpush1.msra.mxu0 %v862
        %918 = vmatprep.subr.mxu0 0.0
        %919 = vmatpush1.msra.mxu0 %v863
        %920 = vmatprep.subr.mxu0 0.0
        %921 = vmatpush1.msra.mxu0 %v864
        %922 = vmatprep.subr.mxu0 0.0
        %923 = vmatpush1.msra.mxu0 %v865
        %924 = vmatprep.subr.mxu0 0.0
        %925 = vmatpush1.msra.mxu0 %v866
        %926 = vmatprep.subr.mxu0 0.0
        %927 = vmatpush1.msra.mxu0 %v867
        %928 = vmatprep.subr.mxu0 0.0
        %929 = vmatpush1.msra.mxu0 %v868
        %930 = vmatprep.subr.mxu0 0.0
        %931 = vmatpush1.msra.mxu0 %v869
        %932 = vmatprep.subr.mxu0 0.0
        %933 = vmatpush1.msra.mxu0 %v870
        %934 = vmatprep.subr.mxu0 0.0
        %935 = vmatpush1.msra.mxu0 %v871
        %936 = vmatprep.mubr.f32.mxu0 %v839
        %937 = vmatmul.mubr.f32.gmra.mrb[0].mxu0 %v838
        %v938 = vpop.f32.mrb[0].mxu0
        %v939 = vadd.f32 0.0, %v938
        %v940 = vpop.f32.mrb[0].mxu0
        %941 = vdwg.mxu0
        %942 = vst [vmem:[%s214] sm:$0xff] %v939
        %s943 = sand.u32 %s97, 1
        %s944 = scalar_lea.sflag [#allocation5], %s943
        %s945 = sand.u32 %s97, 1
        %s946 = smul.addr %s945, 8
        %s947 = scalar_lea.vmem [#allocation9], %s946
        // Predicated region
        $region45: #{tpu_custom_call.1} parent=31 // pred_check
          %p948 = pneg %p107
        $region46: #{tpu_custom_call.1} parent=31 // pred_check_branch
          %950 = sbr.rel (%p948) target = $region48
        $region47: #{tpu_custom_call.1} parent=31 // pred_region
          %s952 = ssub.s32 128, 128
          %953 = vsyncadd %s944, %s952
          %s954 = smul.addr %s21, 128
          %s955 = scalar_lea.hbm %s3, %s954
          %s957 = sshll.u32 %s947, 4
          %s958 = int_to_ptr.vmem [resolvable:$true] %s957
          %960 = dma.vmem_to_hbm [thread:$0]  %s958, 128, %s955, %s944
        $region48: #{tpu_custom_call.1} parent=31 // pred_fallthru
          _
      $region32: #{tpu_custom_call.1} parent=5 // pred_fallthru
        _
      %p961 = scmp.le.s32.totalorder 2, %s16
      // Predicated region
      $region49: #{tpu_custom_call.1} parent=5 // pred_check
        %p962 = pneg %p961
      $region50: #{tpu_custom_call.1} parent=5 // pred_check_branch
        %964 = sbr.rel (%p962) target = $region52
      $region51: #{tpu_custom_call.1} parent=5 // pred_region
        %s965 = ssub.s32 %s16, 2
        // Predicated region
        $region53: #{tpu_custom_call.1} parent=51 // pred_check
          %p966 = pneg %p113
        $region54: #{tpu_custom_call.1} parent=51 // pred_check_branch
          %968 = sbr.rel (%p966) target = $region56
        $region55: #{tpu_custom_call.1} parent=51 // pred_region
          %s969 = sand.u32 %s98, 1
          %s970 = scalar_lea.sflag [#allocation5], %s969
          %s971 = sand.u32 %s98, 1
          %s972 = smul.addr %s971, 8
          %s973 = scalar_lea.vmem [#allocation9], %s972
          %974 = dma.done %s970, 128
        $region56: #{tpu_custom_call.1} parent=51 // pred_fallthru
          _
      $region52: #{tpu_custom_call.1} parent=5 // pred_fallthru
        _
    $region6: #{tpu_custom_call.1} parent=1 // loop_footer
      %s20 = sadd.s32 1, %s16
    $region7: #{tpu_custom_call.1} parent=1 // loop_footer_branch
      %15 = sbr.rel target = $region3
    $region8: #{tpu_custom_call.1} parent=1 // loop_exit
      _
    %975 = vsyncpa [#allocation4], 1
    %s976 = scalar_lea.sflag [#allocation4], 1
    %977 = vsyncpa %s976, 1
    %978 = vsyncpa [#allocation7], 1
    %979 = vsyncpa [#allocation5], 1
    %s980 = scalar_lea.sflag [#allocation5], 1
    %981 = vsyncpa %s980, 1

</llo_original>
